<compile_context>
chip_gen: v7x
topology: tpu7x:2x2x1
jax: 0.10.0
libtpu: 0.0.40
codegen_flags: <defaults>
</compile_context>

<pallas_src>
import jax
import jax.numpy as jnp
from jax.experimental import pallas as pl
from jax.experimental.pallas import tpu as pltpu


# ----------------------------- kernels ------------------------------------


def mymodel_resident_kernel(x_ref, we_ref, be_ref, wsum_ref, bsum_ref, out_ref):
    """Whole-We-resident path: single fused embedding + fused-head matmul.

    Grid axis (parallel) tiles the ncls output dimension; x / We / be are the
    same block for every grid step so they are DMA'd once and stay resident.
    """
    h = jnp.dot(x_ref[...], we_ref[...], preferred_element_type=jnp.float32)
    h = jnp.maximum(h + be_ref[...], 0.0)                      # shared "ViT" embedding
    # Fused heads: logits[0]+logits[1]+logits[2] == h @ (w0+w1+w2) + (b0+b1+b2)
    logits = jnp.dot(h.astype(wsum_ref.dtype), wsum_ref[...],
                     preferred_element_type=jnp.float32) + bsum_ref[...]
    out_ref[...] = logits.astype(out_ref.dtype)


def mymodel_ktiled_kernel(x_ref, we_ref, be_ref, wsum_ref, bsum_ref, out_ref,
                          h_acc):
    """K-tiled embedding matmul (We streamed) with f32 accumulator; fused head
    epilogue on the last K step."""
    k = pl.program_id(0)

    @pl.when(k == 0)
    def _():
        h_acc[...] = jnp.zeros_like(h_acc)

    # x_ref is the full resident [nk, B, tk] activation; pick the k-th K slab
    # with a leading-axis index (no per-step x DMA).
    h_acc[...] += jnp.dot(x_ref[k], we_ref[...],
                          preferred_element_type=jnp.float32)

    @pl.when(k == pl.num_programs(0) - 1)
    def _():
        h = jnp.maximum(h_acc[...] + be_ref[...], 0.0)
        logits = jnp.dot(h.astype(wsum_ref.dtype), wsum_ref[...],
                         preferred_element_type=jnp.float32) + bsum_ref[...]
        out_ref[...] = logits.astype(out_ref.dtype)


# ----------------------------- wrapper ------------------------------------


def _round_up(x, m):
    return (x + m - 1) // m * m


def _vmem_capacity_bytes():
    try:
        return int(pltpu.get_tpu_info().vmem_capacity_bytes)
    except Exception:
        return 64 * 1024 * 1024   # conservative fallback: v7x per-core VMEM


def prepare_params(params):
    """One-time weight prep (hoisted out of the per-call path):
    head fusion (w0+w1+w2, b0+b1+b2) and bf16 casts for the MXU."""
    we, be, w0, b0, w1, b1, w2, b2 = params
    we_bf = we.astype(jnp.bfloat16)                    # [din, hid]
    wsum_bf = (w0 + w1 + w2).astype(jnp.bfloat16)      # [hid, ncls]
    be_f32 = be.astype(jnp.float32)                    # [1, hid]
    bsum_f32 = (b0 + b1 + b2).astype(jnp.float32)      # [1, ncls]
    return we_bf, be_f32, wsum_bf, bsum_f32


def mymodel_forward(x_nchw, prep, *, vmem_budget_bytes=None, force_tk=None):
    """x_nchw: [B, C, H, W] float32; prep = prepare_params(params).
    Returns tr_logits [B, num_classes] (f32)."""
    we_bf, be_f32, wsum_bf, bsum_f32 = prep
    B = x_nchw.shape[0]
    din, hid = we_bf.shape
    ncls = wsum_bf.shape[1]
    din_x = 1
    for d in x_nchw.shape[1:]:
        din_x *= d
    assert din_x == din, (din_x, din)

    x_flat = x_nchw.reshape(B, din).astype(jnp.bfloat16)

    bf, f32 = 2, 4
    cap = _vmem_capacity_bytes()
    # Working-set budget: ~3/8 of physical VMEM (≈24 MiB on v7x, ≈48 MiB on
    # v5e/v6e), leaving headroom for Mosaic internal scratch.
    budget = vmem_budget_bytes if vmem_budget_bytes is not None else (cap * 3) // 8

    # ncls tile for the head/output: 2 parallel tiles when ncls is large so
    # both v7x TensorCores get work; otherwise a single lane-dense tile.
    tn = ncls // 2 if (ncls % 256 == 0 and ncls >= 512) else ncls
    n_j = ncls // tn

    cost = pl.CostEstimate(
        flops=2 * B * (din * hid + hid * ncls),
        transcendentals=0,
        bytes_accessed=(B * din * bf + din * hid * bf + hid * ncls * bf
                        + hid * f32 + ncls * f32 + B * ncls * f32),
    )

    resident_fp = (B * din * bf + din * hid * bf        # x, We (resident)
                   + 2 * hid * tn * bf                  # Wsum tile (dbl-buffered)
                   + 2 * (hid + tn) * f32               # be, bsum
                   + 2 * B * tn * f32                   # out tile
                   + 2 * B * hid * f32)                 # h intermediate slack

    if force_tk is None and resident_fp <= budget:
        # ----------------- RESIDENT path (no K tiling) -----------------
        vmem_limit = int(min(cap * 3 // 4, max(resident_fp * 3 // 2, 16 << 20)))
        return pl.pallas_call(
            mymodel_resident_kernel,
            out_shape=jax.ShapeDtypeStruct((B, ncls), jnp.float32),
            grid_spec=pltpu.PrefetchScalarGridSpec(
                num_scalar_prefetch=0,
                grid=(n_j,),                                   # head/output tiles
                in_specs=[
                    pl.BlockSpec((B, din), lambda j: (0, 0)),      # x  (resident)
                    pl.BlockSpec((din, hid), lambda j: (0, 0)),    # We (resident)
                    pl.BlockSpec((1, hid), lambda j: (0, 0)),      # be
                    pl.BlockSpec((hid, tn), lambda j: (0, j)),     # Wsum tile
                    pl.BlockSpec((1, tn), lambda j: (0, j)),       # bsum tile
                ],
                out_specs=pl.BlockSpec((B, tn), lambda j: (0, j)),
            ),
            compiler_params=pltpu.CompilerParams(
                dimension_semantics=("parallel",),
                vmem_limit_bytes=vmem_limit,
            ),
            cost_estimate=cost,
        )(x_flat, we_bf, be_f32, wsum_bf, bsum_f32)

    # --------------------- K-TILED path (We streamed) ---------------------
    fixed_fp = (B * _round_up(din, 256) * bf     # x (resident, padded)
                + 2 * hid * ncls * bf            # Wsum (resident)
                + 2 * (hid + ncls) * f32         # be, bsum
                + B * hid * f32                  # h accumulator scratch
                + 2 * B * ncls * f32)            # out
    if force_tk is not None:
        tk = max(256, (int(force_tk) // 256) * 256)
    else:
        avail = max(budget - fixed_fp, 0)
        tk = max(256, (avail // (2 * hid * bf)) // 256 * 256)  # 2-deep We buffers
    tk = min(tk, _round_up(din, 256))
    din_p = _round_up(din, tk)
    nk = din_p // tk

    if din_p != din:
        # Zero padding along K is a no-op for the matmul result.
        x_flat = jnp.pad(x_flat, ((0, 0), (0, din_p - din)))
        we_bf = jnp.pad(we_bf, ((0, din_p - din), (0, 0)))

    # Resident activations laid out [nk, B, tk] so the kernel indexes x_ref[k]
    # instead of issuing nk tiny per-step x DMAs.
    # TODO(synk): stream x per K step instead when B*din no longer fits VMEM.
    x3 = jnp.transpose(x_flat.reshape(B, nk, tk), (1, 0, 2))

    ktiled_fp = fixed_fp + B * (din_p - din) * bf + 2 * tk * hid * bf
    vmem_limit = int(min(cap * 3 // 4, max(ktiled_fp * 3 // 2, 16 << 20)))

    return pl.pallas_call(
        mymodel_ktiled_kernel,
        out_shape=jax.ShapeDtypeStruct((B, ncls), jnp.float32),
        grid_spec=pltpu.PrefetchScalarGridSpec(
            num_scalar_prefetch=0,
            grid=(nk,),   # reduction over din: We streaming overlaps the MXU
            in_specs=[
                pl.BlockSpec((nk, B, tk), lambda k: (0, 0, 0)),  # x (resident)
                pl.BlockSpec((tk, hid), lambda k: (k, 0)),        # We streamed
                pl.BlockSpec((1, hid), lambda k: (0, 0)),         # be
                pl.BlockSpec((hid, ncls), lambda k: (0, 0)),      # Wsum resident
                pl.BlockSpec((1, ncls), lambda k: (0, 0)),        # bsum
            ],
            out_specs=pl.BlockSpec((B, ncls), lambda k: (0, 0)),
            scratch_shapes=[pltpu.VMEM((B, hid), jnp.float32)],   # h accumulator
        ),
        compiler_params=pltpu.CompilerParams(
            dimension_semantics=("arbitrary",),   # sequential reduction axis
            vmem_limit_bytes=vmem_limit,
        ),
        cost_estimate=cost,
    )(x3, we_bf, be_f32, wsum_bf, bsum_f32)


# --------------------------- params / reference ----------------------------


def init_params(key, din, hid, ncls):
    ks = jax.random.split(key, 8)
    scale_e = 1.0 / jnp.sqrt(jnp.float32(din))
    scale_h = 1.0 / jnp.sqrt(jnp.float32(hid))
    we = jax.random.normal(ks[0], (din, hid), jnp.float32) * scale_e
    be = jax.random.normal(ks[1], (1, hid), jnp.float32) * 0.01
    w0 = jax.random.normal(ks[2], (hid, ncls), jnp.float32) * scale_h
    b0 = jax.random.normal(ks[3], (1, ncls), jnp.float32) * 0.01
    w1 = jax.random.normal(ks[4], (hid, ncls), jnp.float32) * scale_h
    b1 = jax.random.normal(ks[5], (1, ncls), jnp.float32) * 0.01
    w2 = jax.random.normal(ks[6], (hid, ncls), jnp.float32) * scale_h
    b2 = jax.random.normal(ks[7], (1, ncls), jnp.float32) * 0.01
    return (we, be, w0, b0, w1, b1, w2, b2)


def reference_forward(x_nchw, params):
    """Pure-JAX reference mirroring the kernel's bf16 quantization points."""
    we, be, w0, b0, w1, b1, w2, b2 = params
    B = x_nchw.shape[0]
    x = x_nchw.reshape(B, -1).astype(jnp.bfloat16).astype(jnp.float32)
    we_q = we.astype(jnp.bfloat16).astype(jnp.float32)
    h = jnp.maximum(x @ we_q + be, 0.0)
    h_q = h.astype(jnp.bfloat16).astype(jnp.float32)
    # logits[0] + logits[1] + logits[2] == h @ (w0+w1+w2) + (b0+b1+b2)
    wsum_q = (w0 + w1 + w2).astype(jnp.bfloat16).astype(jnp.float32)
    bsum = b0 + b1 + b2
    return h_q @ wsum_q + bsum


# --------------------------------- main ------------------------------------


if __name__ == "__main__":
    key = jax.random.PRNGKey(0)
    kx, kp, kx2, kp2 = jax.random.split(key, 4)

    # --- Test 1: toy config -> RESIDENT path (no K tiling, grid=(1,)) ---
    B, C, H, W = 2, 4, 16, 16
    HID, NCLS = 128, 128
    DIN = C * H * W                              # 1024
    x = jax.random.normal(kx, (B, C, H, W), jnp.float32)
    params = init_params(kp, DIN, HID, NCLS)
    prep = prepare_params(params)                # one-time weight fusion/casts
    out = jax.block_until_ready(mymodel_forward(x, prep))
    ref = reference_forward(x, params)
    assert out.shape == (B, NCLS)
    assert jnp.allclose(out, ref, atol=2e-2, rtol=2e-2), (
        float(jnp.max(jnp.abs(out - ref))))

    # --- Test 2: force the K-tiled streaming path (larger din/hid/ncls) ---
    B2, C2, H2, W2 = 4, 8, 16, 16
    HID2, NCLS2 = 256, 256
    DIN2 = C2 * H2 * W2                          # 2048 -> four K tiles of 512
    x2 = jax.random.normal(kx2, (B2, C2, H2, W2), jnp.float32)
    params2 = init_params(kp2, DIN2, HID2, NCLS2)
    prep2 = prepare_params(params2)
    out2 = jax.block_until_ready(mymodel_forward(x2, prep2, force_tk=512))
    ref2 = reference_forward(x2, params2)
    assert out2.shape == (B2, NCLS2)
    assert jnp.allclose(out2, ref2, atol=2e-2, rtol=2e-2), (
        float(jnp.max(jnp.abs(out2 - ref2))))

    print("KERNEL_OK")
</pallas_src>

<mosaic_0001>
module attributes {stable_mosaic.version = 11 : i64} {
  func.func @mymodel_resident_kernel(%arg0: i32, %arg1: memref<2x1024xbf16, #tpu.memory_space<vmem>>, %arg2: memref<1024x128xbf16, #tpu.memory_space<vmem>>, %arg3: memref<1x128xf32, #tpu.memory_space<vmem>>, %arg4: memref<128x128xbf16, #tpu.memory_space<vmem>>, %arg5: memref<1x128xf32, #tpu.memory_space<vmem>>, %arg6: memref<2x128xf32, #tpu.memory_space<vmem>>) attributes {dimension_semantics = [#tpu.dimension_semantics<parallel>], iteration_bounds = array<i64: 1>, scalar_prefetch = 0 : i64, scratch_operands = 0 : i64, tpu.core_type = #tpu.core_type<tc>, window_params = [{pipeline_mode = #tpu.pipeline_mode<synchronous>, transform_indices = @transform_0, window_bounds = array<i64: 2, 1024>}, {pipeline_mode = #tpu.pipeline_mode<synchronous>, transform_indices = @transform_1, window_bounds = array<i64: 1024, 128>}, {pipeline_mode = #tpu.pipeline_mode<synchronous>, transform_indices = @transform_2, window_bounds = array<i64: 1, 128>}, {transform_indices = @transform_3, window_bounds = array<i64: 128, 128>}, {transform_indices = @transform_4, window_bounds = array<i64: 1, 128>}, {transform_indices = @transform_5, window_bounds = array<i64: 2, 128>}]} {
    %c0 = arith.constant 0 : index
    %c0_0 = arith.constant 0 : index
    %0 = vector.load %arg1[%c0, %c0_0] : memref<2x1024xbf16, #tpu.memory_space<vmem>>, vector<2x1024xbf16>
    %c0_1 = arith.constant 0 : index
    %c0_2 = arith.constant 0 : index
    %1 = vector.load %arg2[%c0_1, %c0_2] : memref<1024x128xbf16, #tpu.memory_space<vmem>>, vector<1024x128xbf16>
    %cst = arith.constant dense<0.000000e+00> : vector<2x128xf32>
    %2 = tpu.matmul %0, %1, %cst {dimension_numbers = #tpu.dot_dimension_numbers<[1], [0], [0], [1], [0, 0, 1, 1], [], []>} : vector<2x1024xbf16>, vector<1024x128xbf16>, vector<2x128xf32> -> vector<2x128xf32>
    %c0_3 = arith.constant 0 : index
    %c0_4 = arith.constant 0 : index
    %3 = vector.load %arg3[%c0_3, %c0_4] : memref<1x128xf32, #tpu.memory_space<vmem>>, vector<1x128xf32>
    %4 = vector.broadcast %3 : vector<1x128xf32> to vector<2x128xf32>
    %5 = arith.addf %2, %4 : vector<2x128xf32>
    %cst_5 = arith.constant 0.000000e+00 : f32
    %6 = vector.broadcast %cst_5 : f32 to vector<2x128xf32>
    %7 = arith.maximumf %5, %6 : vector<2x128xf32>
    %8 = arith.truncf %7 : vector<2x128xf32> to vector<2x128xbf16>
    %c0_6 = arith.constant 0 : index
    %c0_7 = arith.constant 0 : index
    %9 = vector.load %arg4[%c0_6, %c0_7] : memref<128x128xbf16, #tpu.memory_space<vmem>>, vector<128x128xbf16>
    %cst_8 = arith.constant dense<0.000000e+00> : vector<2x128xf32>
    %10 = tpu.matmul %8, %9, %cst_8 {dimension_numbers = #tpu.dot_dimension_numbers<[1], [0], [0], [1], [0, 0, 1, 1], [], []>} : vector<2x128xbf16>, vector<128x128xbf16>, vector<2x128xf32> -> vector<2x128xf32>
    %c0_9 = arith.constant 0 : index
    %c0_10 = arith.constant 0 : index
    %11 = vector.load %arg5[%c0_9, %c0_10] : memref<1x128xf32, #tpu.memory_space<vmem>>, vector<1x128xf32>
    %12 = vector.broadcast %11 : vector<1x128xf32> to vector<2x128xf32>
    %13 = arith.addf %10, %12 : vector<2x128xf32>
    %c0_11 = arith.constant 0 : index
    %c0_12 = arith.constant 0 : index
    %14 = vector.load %arg6[%c0_11, %c0_12] : memref<2x128xf32, #tpu.memory_space<vmem>>, vector<2x128xf32>
    tpu.vector_store %arg6[%c0_11, %c0_12], %13 {strides = array<i32>} : memref<2x128xf32, #tpu.memory_space<vmem>>, vector<2x128xf32>,
    return
  }
  func.func @transform_0(%arg0: i32) -> (i32, i32) {
    %c0_i32 = arith.constant 0 : i32
    %c0_i32_0 = arith.constant 0 : i32
    %c0_i32_1 = arith.constant 0 : i32
    return %c0_i32, %c0_i32_0 : i32, i32
  }
  func.func @transform_1(%arg0: i32) -> (i32, i32) {
    %c0_i32 = arith.constant 0 : i32
    %c0_i32_0 = arith.constant 0 : i32
    %c0_i32_1 = arith.constant 0 : i32
    return %c0_i32, %c0_i32_0 : i32, i32
  }
  func.func @transform_2(%arg0: i32) -> (i32, i32) {
    %c0_i32 = arith.constant 0 : i32
    %c0_i32_0 = arith.constant 0 : i32
    %c0_i32_1 = arith.constant 0 : i32
    return %c0_i32, %c0_i32_0 : i32, i32
  }
  func.func @transform_3(%arg0: i32) -> (i32, i32) {
    %c0_i32 = arith.constant 0 : i32
    %c0_i32_0 = arith.constant 0 : i32
    return %c0_i32, %arg0 : i32, i32
  }
  func.func @transform_4(%arg0: i32) -> (i32, i32) {
    %c0_i32 = arith.constant 0 : i32
    %c0_i32_0 = arith.constant 0 : i32
    return %c0_i32, %arg0 : i32, i32
  }
  func.func @transform_5(%arg0: i32) -> (i32, i32) {
    %c0_i32 = arith.constant 0 : i32
    %c0_i32_0 = arith.constant 0 : i32
    return %c0_i32, %arg0 : i32, i32
  }
}

</mosaic_0001>

<llo_original>
// kernel: tpu_custom_call.1
$region0: #{tpu_custom_call.1}
  #allocation0 [shape = 'u32[]', space=smem, size = 0x4, offset = 0x4, fixed_abs, tag = 'smem constant byte address 0x4 - core index']
  #allocation1 [shape = 'u32[144,128]{1,0:T(1,128)}', space=vmem, size = 0x12000, scoped, tag = 'internal scratch']
  %s0 = inlined_call_operand.hbm [shape: bf16[2,1024], index: 0, kind: input, shape index: {}]
  %s1 = inlined_call_operand.hbm [shape: bf16[1024,128], index: 1, kind: input, shape index: {}]
  %s2 = inlined_call_operand.vmem [shape: f32[1,128], index: 2, kind: input, shape index: {}]
  %s3 = inlined_call_operand.hbm [shape: bf16[128,128], index: 3, kind: input, shape index: {}]
  %s4 = inlined_call_operand.vmem [shape: f32[1,128], index: 4, kind: input, shape index: {}]
  %s5 = inlined_call_operand.hbm [shape: f32[2,128], index: 5, kind: output, shape index: {}]
  %s6 = sld [smem:[#allocation0]]
  $region42: #{tpu_custom_call.1} parent=0
    _
  %s8 = ssub.s32 1, %s6
  %s9 = scalar_select 0, %s8, %s6
  $region1: #{tpu_custom_call.1} parent=0
    #allocation2 [shape = 'u8[4096]{0}', space=vmem, size = 0x1000, scoped, tag = 'input window, operand 0, single buffered']
    #allocation3 [shape = 's32[1]{0}', space=sflag, size = 0x4, scoped, tag = 'scoped memory for tpu_custom_call.1']
    #allocation4 [shape = 's32[1]{0}', space=sflag, size = 0x4, scoped, tag = 'scoped memory for tpu_custom_call.1']
    #allocation5 [shape = 'u8[262144]{0}', space=vmem, size = 0x40000, scoped, tag = 'input window, operand 1, single buffered']
    #allocation6 [shape = 's32[1]{0}', space=sflag, size = 0x4, scoped, tag = 'scoped memory for tpu_custom_call.1']
    #allocation7 [shape = 'u8[32768]{0}', space=vmem, size = 0x8000, scoped, tag = 'input window, operand 3, single buffered']
    #allocation8 [shape = 'u8[1024]{0}', space=vmem, size = 0x400, scoped, tag = 'output window, operand 0, single buffered']
    %10 = vsyncpa [#allocation3], 0
    %11 = vsyncpa [#allocation6], 0
    %12 = vsyncpa [#allocation4], 0
    // Predicated region
    $region2: #{tpu_custom_call.1} parent=1 // pred_check
      _
    $region3: #{tpu_custom_call.1} parent=1 // pred_check_branch
      %14 = sbr.rel (0) target = $region5
    $region4: #{tpu_custom_call.1} parent=1 // pred_region
      %s16 = ssub.s32 128, 128
      %17 = vsyncadd [#allocation3], %s16
      %s19 = sshll.u32 [#allocation2], 4
      %s20 = int_to_ptr.vmem [resolvable:$true] %s19
      %22 = dma.hbm_to_vmem [thread:$0]  %s0, 128, %s20, [#allocation3]
    $region5: #{tpu_custom_call.1} parent=1 // pred_fallthru
      _
    // Predicated region
    $region6: #{tpu_custom_call.1} parent=1 // pred_check
      _
    $region7: #{tpu_custom_call.1} parent=1 // pred_check_branch
      %24 = sbr.rel (0) target = $region9
    $region8: #{tpu_custom_call.1} parent=1 // pred_region
      %s26 = ssub.s32 8192, 8192
      %27 = vsyncadd [#allocation6], %s26
      %s28 = sshll.u32 [#allocation5], 4
      %s29 = int_to_ptr.vmem [resolvable:$true] %s28
      %34 = dma.hbm_to_vmem [thread:$0]  %s1, 8192, %s29, [#allocation6], 64, 64, 4
    $region9: #{tpu_custom_call.1} parent=1 // pred_fallthru
      _
    // Predicated region
    $region10: #{tpu_custom_call.1} parent=1 // pred_check
      _
    $region11: #{tpu_custom_call.1} parent=1 // pred_check_branch
      %36 = sbr.rel (0) target = $region13
    $region12: #{tpu_custom_call.1} parent=1 // pred_region
      _
    $region13: #{tpu_custom_call.1} parent=1 // pred_fallthru
      _
    // Predicated region
    $region14: #{tpu_custom_call.1} parent=1 // pred_check
      _
    $region15: #{tpu_custom_call.1} parent=1 // pred_check_branch
      %38 = sbr.rel (0) target = $region17
    $region16: #{tpu_custom_call.1} parent=1 // pred_region
      %s40 = ssub.s32 1024, 1024
      %41 = vsyncadd [#allocation6], %s40
      %s42 = sshll.u32 [#allocation7], 4
      %s43 = int_to_ptr.vmem [resolvable:$true] %s42
      %48 = dma.hbm_to_vmem [thread:$0]  %s3, 1024, %s43, [#allocation6], 64, 64, 4
    $region17: #{tpu_custom_call.1} parent=1 // pred_fallthru
      _
    // Predicated region
    $region18: #{tpu_custom_call.1} parent=1 // pred_check
      _
    $region19: #{tpu_custom_call.1} parent=1 // pred_check_branch
      %50 = sbr.rel (0) target = $region21
    $region20: #{tpu_custom_call.1} parent=1 // pred_region
      _
    $region21: #{tpu_custom_call.1} parent=1 // pred_fallthru
      _
    // Predicated region
    $region22: #{tpu_custom_call.1} parent=1 // pred_check
      _
    $region23: #{tpu_custom_call.1} parent=1 // pred_check_branch
      %52 = sbr.rel (0) target = $region25
    $region24: #{tpu_custom_call.1} parent=1 // pred_region
      %53 = dma.done [#allocation3], 128
    $region25: #{tpu_custom_call.1} parent=1 // pred_fallthru
      _
    // Predicated region
    $region26: #{tpu_custom_call.1} parent=1 // pred_check
      _
    $region27: #{tpu_custom_call.1} parent=1 // pred_check_branch
      %55 = sbr.rel (0) target = $region29
    $region28: #{tpu_custom_call.1} parent=1 // pred_region
      %56 = dma.done [#allocation6], 8192
    $region29: #{tpu_custom_call.1} parent=1 // pred_fallthru
      _
    // Predicated region
    $region30: #{tpu_custom_call.1} parent=1 // pred_check
      _
    $region31: #{tpu_custom_call.1} parent=1 // pred_check_branch
      %58 = sbr.rel (0) target = $region33
    $region32: #{tpu_custom_call.1} parent=1 // pred_region
      %59 = dma.done [#allocation6], 1024
    $region33: #{tpu_custom_call.1} parent=1 // pred_fallthru
      _
    %v61 = vld [vmem:[#allocation2] sm:$0xff]
    %v62 = vld [vmem:[#allocation5] sm:$0xf]
    %v63 = vld [vmem:[#allocation5 + $0x4] sm:$0xf]
    %v64 = vld [vmem:[#allocation5 + $0x8] sm:$0xf]
    %v65 = vld [vmem:[#allocation5 + $0xc] sm:$0xf]
    %v66 = vld [vmem:[#allocation5 + $0x10] sm:$0xf]
    %v67 = vld [vmem:[#allocation5 + $0x14] sm:$0xf]
    %v68 = vld [vmem:[#allocation5 + $0x18] sm:$0xf]
    %v69 = vld [vmem:[#allocation5 + $0x1c] sm:$0xf]
    %v70 = vld [vmem:[#allocation5 + $0x20] sm:$0xf]
    %v71 = vld [vmem:[#allocation5 + $0x24] sm:$0xf]
    %v72 = vld [vmem:[#allocation5 + $0x28] sm:$0xf]
    %v73 = vld [vmem:[#allocation5 + $0x2c] sm:$0xf]
    %v74 = vld [vmem:[#allocation5 + $0x30] sm:$0xf]
    %v75 = vld [vmem:[#allocation5 + $0x34] sm:$0xf]
    %v76 = vld [vmem:[#allocation5 + $0x38] sm:$0xf]
    %v77 = vld [vmem:[#allocation5 + $0x3c] sm:$0xf]
    %v78 = vld [vmem:[#allocation5 + $0x40] sm:$0xf]
    %v79 = vld [vmem:[#allocation5 + $0x44] sm:$0xf]
    %v80 = vld [vmem:[#allocation5 + $0x48] sm:$0xf]
    %v81 = vld [vmem:[#allocation5 + $0x4c] sm:$0xf]
    %v82 = vld [vmem:[#allocation5 + $0x50] sm:$0xf]
    %v83 = vld [vmem:[#allocation5 + $0x54] sm:$0xf]
    %v84 = vld [vmem:[#allocation5 + $0x58] sm:$0xf]
    %v85 = vld [vmem:[#allocation5 + $0x5c] sm:$0xf]
    %v86 = vld [vmem:[#allocation5 + $0x60] sm:$0xf]
    %v87 = vld [vmem:[#allocation5 + $0x64] sm:$0xf]
    %v88 = vld [vmem:[#allocation5 + $0x68] sm:$0xf]
    %v89 = vld [vmem:[#allocation5 + $0x6c] sm:$0xf]
    %v90 = vld [vmem:[#allocation5 + $0x70] sm:$0xf]
    %v91 = vld [vmem:[#allocation5 + $0x74] sm:$0xf]
    %v92 = vld [vmem:[#allocation5 + $0x78] sm:$0xf]
    %v93 = vld [vmem:[#allocation5 + $0x7c] sm:$0xf]
    %v94 = vld [vmem:[#allocation5 + $0x80] sm:$0xf]
    %v95 = vld [vmem:[#allocation5 + $0x84] sm:$0xf]
    %v96 = vld [vmem:[#allocation5 + $0x88] sm:$0xf]
    %v97 = vld [vmem:[#allocation5 + $0x8c] sm:$0xf]
    %v98 = vld [vmem:[#allocation5 + $0x90] sm:$0xf]
    %v99 = vld [vmem:[#allocation5 + $0x94] sm:$0xf]
    %v100 = vld [vmem:[#allocation5 + $0x98] sm:$0xf]
    %v101 = vld [vmem:[#allocation5 + $0x9c] sm:$0xf]
    %v102 = vld [vmem:[#allocation5 + $0xa0] sm:$0xf]
    %v103 = vld [vmem:[#allocation5 + $0xa4] sm:$0xf]
    %v104 = vld [vmem:[#allocation5 + $0xa8] sm:$0xf]
    %v105 = vld [vmem:[#allocation5 + $0xac] sm:$0xf]
    %v106 = vld [vmem:[#allocation5 + $0xb0] sm:$0xf]
    %v107 = vld [vmem:[#allocation5 + $0xb4] sm:$0xf]
    %v108 = vld [vmem:[#allocation5 + $0xb8] sm:$0xf]
    %v109 = vld [vmem:[#allocation5 + $0xbc] sm:$0xf]
    %v110 = vld [vmem:[#allocation5 + $0xc0] sm:$0xf]
    %v111 = vld [vmem:[#allocation5 + $0xc4] sm:$0xf]
    %v112 = vld [vmem:[#allocation5 + $0xc8] sm:$0xf]
    %v113 = vld [vmem:[#allocation5 + $0xcc] sm:$0xf]
    %v114 = vld [vmem:[#allocation5 + $0xd0] sm:$0xf]
    %v115 = vld [vmem:[#allocation5 + $0xd4] sm:$0xf]
    %v116 = vld [vmem:[#allocation5 + $0xd8] sm:$0xf]
    %v117 = vld [vmem:[#allocation5 + $0xdc] sm:$0xf]
    %v118 = vld [vmem:[#allocation5 + $0xe0] sm:$0xf]
    %v119 = vld [vmem:[#allocation5 + $0xe4] sm:$0xf]
    %v120 = vld [vmem:[#allocation5 + $0xe8] sm:$0xf]
    %v121 = vld [vmem:[#allocation5 + $0xec] sm:$0xf]
    %v122 = vld [vmem:[#allocation5 + $0xf0] sm:$0xf]
    %v123 = vld [vmem:[#allocation5 + $0xf4] sm:$0xf]
    %v124 = vld [vmem:[#allocation5 + $0xf8] sm:$0xf]
    %v125 = vld [vmem:[#allocation5 + $0xfc] sm:$0xf]
    %v126 = vld [vmem:[#allocation5 + $0x100] sm:$0xf]
    %v127 = vld [vmem:[#allocation5 + $0x104] sm:$0xf]
    %v128 = vld [vmem:[#allocation5 + $0x108] sm:$0xf]
    %v129 = vld [vmem:[#allocation5 + $0x10c] sm:$0xf]
    %v130 = vld [vmem:[#allocation5 + $0x110] sm:$0xf]
    %v131 = vld [vmem:[#allocation5 + $0x114] sm:$0xf]
    %v132 = vld [vmem:[#allocation5 + $0x118] sm:$0xf]
    %v133 = vld [vmem:[#allocation5 + $0x11c] sm:$0xf]
    %v134 = vld [vmem:[#allocation5 + $0x120] sm:$0xf]
    %v135 = vld [vmem:[#allocation5 + $0x124] sm:$0xf]
    %v136 = vld [vmem:[#allocation5 + $0x128] sm:$0xf]
    %v137 = vld [vmem:[#allocation5 + $0x12c] sm:$0xf]
    %v138 = vld [vmem:[#allocation5 + $0x130] sm:$0xf]
    %v139 = vld [vmem:[#allocation5 + $0x134] sm:$0xf]
    %v140 = vld [vmem:[#allocation5 + $0x138] sm:$0xf]
    %v141 = vld [vmem:[#allocation5 + $0x13c] sm:$0xf]
    %v142 = vld [vmem:[#allocation5 + $0x140] sm:$0xf]
    %v143 = vld [vmem:[#allocation5 + $0x144] sm:$0xf]
    %v144 = vld [vmem:[#allocation5 + $0x148] sm:$0xf]
    %v145 = vld [vmem:[#allocation5 + $0x14c] sm:$0xf]
    %v146 = vld [vmem:[#allocation5 + $0x150] sm:$0xf]
    %v147 = vld [vmem:[#allocation5 + $0x154] sm:$0xf]
    %v148 = vld [vmem:[#allocation5 + $0x158] sm:$0xf]
    %v149 = vld [vmem:[#allocation5 + $0x15c] sm:$0xf]
    %v150 = vld [vmem:[#allocation5 + $0x160] sm:$0xf]
    %v151 = vld [vmem:[#allocation5 + $0x164] sm:$0xf]
    %v152 = vld [vmem:[#allocation5 + $0x168] sm:$0xf]
    %v153 = vld [vmem:[#allocation5 + $0x16c] sm:$0xf]
    %v154 = vld [vmem:[#allocation5 + $0x170] sm:$0xf]
    %v155 = vld [vmem:[#allocation5 + $0x174] sm:$0xf]
    %v156 = vld [vmem:[#allocation5 + $0x178] sm:$0xf]
    %v157 = vld [vmem:[#allocation5 + $0x17c] sm:$0xf]
    %v158 = vld [vmem:[#allocation5 + $0x180] sm:$0xf]
    %v159 = vld [vmem:[#allocation5 + $0x184] sm:$0xf]
    %v160 = vld [vmem:[#allocation5 + $0x188] sm:$0xf]
    %v161 = vld [vmem:[#allocation5 + $0x18c] sm:$0xf]
    %v162 = vld [vmem:[#allocation5 + $0x190] sm:$0xf]
    %v163 = vld [vmem:[#allocation5 + $0x194] sm:$0xf]
    %v164 = vld [vmem:[#allocation5 + $0x198] sm:$0xf]
    %v165 = vld [vmem:[#allocation5 + $0x19c] sm:$0xf]
    %v166 = vld [vmem:[#allocation5 + $0x1a0] sm:$0xf]
    %v167 = vld [vmem:[#allocation5 + $0x1a4] sm:$0xf]
    %v168 = vld [vmem:[#allocation5 + $0x1a8] sm:$0xf]
    %v169 = vld [vmem:[#allocation5 + $0x1ac] sm:$0xf]
    %v170 = vld [vmem:[#allocation5 + $0x1b0] sm:$0xf]
    %v171 = vld [vmem:[#allocation5 + $0x1b4] sm:$0xf]
    %v172 = vld [vmem:[#allocation5 + $0x1b8] sm:$0xf]
    %v173 = vld [vmem:[#allocation5 + $0x1bc] sm:$0xf]
    %v174 = vld [vmem:[#allocation5 + $0x1c0] sm:$0xf]
    %v175 = vld [vmem:[#allocation5 + $0x1c4] sm:$0xf]
    %v176 = vld [vmem:[#allocation5 + $0x1c8] sm:$0xf]
    %v177 = vld [vmem:[#allocation5 + $0x1cc] sm:$0xf]
    %v178 = vld [vmem:[#allocation5 + $0x1d0] sm:$0xf]
    %v179 = vld [vmem:[#allocation5 + $0x1d4] sm:$0xf]
    %v180 = vld [vmem:[#allocation5 + $0x1d8] sm:$0xf]
    %v181 = vld [vmem:[#allocation5 + $0x1dc] sm:$0xf]
    %v182 = vld [vmem:[#allocation5 + $0x1e0] sm:$0xf]
    %v183 = vld [vmem:[#allocation5 + $0x1e4] sm:$0xf]
    %v184 = vld [vmem:[#allocation5 + $0x1e8] sm:$0xf]
    %v185 = vld [vmem:[#allocation5 + $0x1ec] sm:$0xf]
    %v186 = vld [vmem:[#allocation5 + $0x1f0] sm:$0xf]
    %v187 = vld [vmem:[#allocation5 + $0x1f4] sm:$0xf]
    %v188 = vld [vmem:[#allocation5 + $0x1f8] sm:$0xf]
    %v189 = vld [vmem:[#allocation5 + $0x1fc] sm:$0xf]
    %v190 = vld [vmem:[%s2] sm:$0x1]
    %v192 = vlaneseq
    %v193 = vshrl.u32 %v192, 7
    %v194 = vsub.s32 0, %v193
    %v195 = vrot.slane %v190, %v194
    %v198 = vcombine.high %v61, %v61
    %v200 = vunpack.c.l.s4 1966171168
    %v201 = vunpack.c.0.s8 %v200
    %v202 = vlaneseq
    %v203 = vshrl.u32 %v202, 7
    %v204 = vsub.s32 %v201, %v203
    %v205 = vrot.slane %v61, %v204
    %v207 = vunpack.c.l.s4 1966171168
    %v208 = vunpack.c.0.s8 %v207
    %v209 = vlaneseq
    %v210 = vshrl.u32 %v209, 7
    %v211 = vsub.s32 %v208, %v210
    %v212 = vrot.slane %v198, %v211
    %v213 = vcombine.high %v205, %v205
    %v214 = vcombine.high %v212, %v212
    %v216 = vunpack.c.l.s4 1966171168
    %v217 = vunpack.c.0.s8 %v216
    %v218 = vlaneseq
    %v219 = vshrl.u32 %v218, 7
    %v220 = vsub.s32 %v217, %v219
    %v221 = vrot.slane %v205, %v220
    %v223 = vunpack.c.l.s4 1966171168
    %v224 = vunpack.c.0.s8 %v223
    %v225 = vlaneseq
    %v226 = vshrl.u32 %v225, 7
    %v227 = vsub.s32 %v224, %v226
    %v228 = vrot.slane %v212, %v227
    %v230 = vunpack.c.l.s4 1966171168
    %v231 = vunpack.c.0.s8 %v230
    %v232 = vlaneseq
    %v233 = vshrl.u32 %v232, 7
    %v234 = vsub.s32 %v231, %v233
    %v235 = vrot.slane %v213, %v234
    %v237 = vunpack.c.l.s4 1966171168
    %v238 = vunpack.c.0.s8 %v237
    %v239 = vlaneseq
    %v240 = vshrl.u32 %v239, 7
    %v241 = vsub.s32 %v238, %v240
    %v242 = vrot.slane %v214, %v241
    %v243 = vcombine.high %v221, %v221
    %v244 = vcombine.high %v228, %v228
    %v245 = vcombine.high %v235, %v235
    %v246 = vcombine.high %v242, %v242
    %v383 = vunpack.c.l.b16 %v62
    %v384 = vunpack.c.l.b16 %v63
    %v385 = vunpack.c.l.b16 %v64
    %v386 = vunpack.c.l.b16 %v65
    %v387 = vunpack.c.l.b16 %v66
    %v388 = vunpack.c.l.b16 %v67
    %v389 = vunpack.c.l.b16 %v68
    %v390 = vunpack.c.l.b16 %v69
    %v391 = vunpack.c.l.b16 %v70
    %v392 = vunpack.c.l.b16 %v71
    %v393 = vunpack.c.l.b16 %v72
    %v394 = vunpack.c.l.b16 %v73
    %v395 = vunpack.c.l.b16 %v74
    %v396 = vunpack.c.l.b16 %v75
    %v397 = vunpack.c.l.b16 %v76
    %v398 = vunpack.c.l.b16 %v77
    %v399 = vunpack.c.l.b16 %v78
    %v400 = vunpack.c.l.b16 %v79
    %v401 = vunpack.c.l.b16 %v80
    %v402 = vunpack.c.l.b16 %v81
    %v403 = vunpack.c.l.b16 %v82
    %v404 = vunpack.c.l.b16 %v83
    %v405 = vunpack.c.l.b16 %v84
    %v406 = vunpack.c.l.b16 %v85
    %v407 = vunpack.c.l.b16 %v86
    %v408 = vunpack.c.l.b16 %v87
    %v409 = vunpack.c.l.b16 %v88
    %v410 = vunpack.c.l.b16 %v89
    %v411 = vunpack.c.l.b16 %v90
    %v412 = vunpack.c.l.b16 %v91
    %v413 = vunpack.c.l.b16 %v92
    %v414 = vunpack.c.l.b16 %v93
    %v415 = vunpack.c.l.b16 %v94
    %v416 = vunpack.c.l.b16 %v95
    %v417 = vunpack.c.l.b16 %v96
    %v418 = vunpack.c.l.b16 %v97
    %v419 = vunpack.c.l.b16 %v98
    %v420 = vunpack.c.l.b16 %v99
    %v421 = vunpack.c.l.b16 %v100
    %v422 = vunpack.c.l.b16 %v101
    %v423 = vunpack.c.l.b16 %v102
    %v424 = vunpack.c.l.b16 %v103
    %v425 = vunpack.c.l.b16 %v104
    %v426 = vunpack.c.l.b16 %v105
    %v427 = vunpack.c.l.b16 %v106
    %v428 = vunpack.c.l.b16 %v107
    %v429 = vunpack.c.l.b16 %v108
    %v430 = vunpack.c.l.b16 %v109
    %v431 = vunpack.c.l.b16 %v110
    %v432 = vunpack.c.l.b16 %v111
    %v433 = vunpack.c.l.b16 %v112
    %v434 = vunpack.c.l.b16 %v113
    %v435 = vunpack.c.l.b16 %v114
    %v436 = vunpack.c.l.b16 %v115
    %v437 = vunpack.c.l.b16 %v116
    %v438 = vunpack.c.l.b16 %v117
    %v439 = vunpack.c.l.b16 %v118
    %v440 = vunpack.c.l.b16 %v119
    %v441 = vunpack.c.l.b16 %v120
    %v442 = vunpack.c.l.b16 %v121
    %v443 = vunpack.c.l.b16 %v122
    %v444 = vunpack.c.l.b16 %v123
    %v445 = vunpack.c.l.b16 %v124
    %v446 = vunpack.c.l.b16 %v125
    %v447 = vunpack.c.l.b16 %v126
    %v448 = vunpack.c.l.b16 %v127
    %v449 = vunpack.c.l.b16 %v128
    %v450 = vunpack.c.l.b16 %v129
    %v451 = vunpack.c.l.b16 %v130
    %v452 = vunpack.c.l.b16 %v131
    %v453 = vunpack.c.l.b16 %v132
    %v454 = vunpack.c.l.b16 %v133
    %v455 = vunpack.c.l.b16 %v134
    %v456 = vunpack.c.l.b16 %v135
    %v457 = vunpack.c.l.b16 %v136
    %v458 = vunpack.c.l.b16 %v137
    %v459 = vunpack.c.l.b16 %v138
    %v460 = vunpack.c.l.b16 %v139
    %v461 = vunpack.c.l.b16 %v140
    %v462 = vunpack.c.l.b16 %v141
    %v463 = vunpack.c.l.b16 %v142
    %v464 = vunpack.c.l.b16 %v143
    %v465 = vunpack.c.l.b16 %v144
    %v466 = vunpack.c.l.b16 %v145
    %v467 = vunpack.c.l.b16 %v146
    %v468 = vunpack.c.l.b16 %v147
    %v469 = vunpack.c.l.b16 %v148
    %v470 = vunpack.c.l.b16 %v149
    %v471 = vunpack.c.l.b16 %v150
    %v472 = vunpack.c.l.b16 %v151
    %v473 = vunpack.c.l.b16 %v152
    %v474 = vunpack.c.l.b16 %v153
    %v475 = vunpack.c.l.b16 %v154
    %v476 = vunpack.c.l.b16 %v155
    %v477 = vunpack.c.l.b16 %v156
    %v478 = vunpack.c.l.b16 %v157
    %v479 = vunpack.c.l.b16 %v158
    %v480 = vunpack.c.l.b16 %v159
    %v481 = vunpack.c.l.b16 %v160
    %v482 = vunpack.c.l.b16 %v161
    %v483 = vunpack.c.l.b16 %v162
    %v484 = vunpack.c.l.b16 %v163
    %v485 = vunpack.c.l.b16 %v164
    %v486 = vunpack.c.l.b16 %v165
    %v487 = vunpack.c.l.b16 %v166
    %v488 = vunpack.c.l.b16 %v167
    %v489 = vunpack.c.l.b16 %v168
    %v490 = vunpack.c.l.b16 %v169
    %v491 = vunpack.c.l.b16 %v170
    %v492 = vunpack.c.l.b16 %v171
    %v493 = vunpack.c.l.b16 %v172
    %v494 = vunpack.c.l.b16 %v173
    %v495 = vunpack.c.l.b16 %v174
    %v496 = vunpack.c.l.b16 %v175
    %v497 = vunpack.c.l.b16 %v176
    %v498 = vunpack.c.l.b16 %v177
    %v499 = vunpack.c.l.b16 %v178
    %v500 = vunpack.c.l.b16 %v179
    %v501 = vunpack.c.l.b16 %v180
    %v502 = vunpack.c.l.b16 %v181
    %v503 = vunpack.c.l.b16 %v182
    %v504 = vunpack.c.l.b16 %v183
    %v505 = vunpack.c.l.b16 %v184
    %v506 = vunpack.c.l.b16 %v185
    %v507 = vunpack.c.l.b16 %v186
    %v508 = vunpack.c.l.b16 %v187
    %v509 = vunpack.c.l.b16 %v188
    %v510 = vunpack.c.l.b16 %v189
    %v511 = vpack.c.b16 %v384, %v383
    %v512 = vpack.c.b16 %v386, %v385
    %v513 = vpack.c.b16 %v388, %v387
    %v514 = vpack.c.b16 %v390, %v389
    %v515 = vpack.c.b16 %v392, %v391
    %v516 = vpack.c.b16 %v394, %v393
    %v517 = vpack.c.b16 %v396, %v395
    %v518 = vpack.c.b16 %v398, %v397
    %v519 = vpack.c.b16 %v400, %v399
    %v520 = vpack.c.b16 %v402, %v401
    %v521 = vpack.c.b16 %v404, %v403
    %v522 = vpack.c.b16 %v406, %v405
    %v523 = vpack.c.b16 %v408, %v407
    %v524 = vpack.c.b16 %v410, %v409
    %v525 = vpack.c.b16 %v412, %v411
    %v526 = vpack.c.b16 %v414, %v413
    %v527 = vpack.c.b16 %v416, %v415
    %v528 = vpack.c.b16 %v418, %v417
    %v529 = vpack.c.b16 %v420, %v419
    %v530 = vpack.c.b16 %v422, %v421
    %v531 = vpack.c.b16 %v424, %v423
    %v532 = vpack.c.b16 %v426, %v425
    %v533 = vpack.c.b16 %v428, %v427
    %v534 = vpack.c.b16 %v430, %v429
    %v535 = vpack.c.b16 %v432, %v431
    %v536 = vpack.c.b16 %v434, %v433
    %v537 = vpack.c.b16 %v436, %v435
    %v538 = vpack.c.b16 %v438, %v437
    %v539 = vpack.c.b16 %v440, %v439
    %v540 = vpack.c.b16 %v442, %v441
    %v541 = vpack.c.b16 %v444, %v443
    %v542 = vpack.c.b16 %v446, %v445
    %v543 = vpack.c.b16 %v448, %v447
    %v544 = vpack.c.b16 %v450, %v449
    %v545 = vpack.c.b16 %v452, %v451
    %v546 = vpack.c.b16 %v454, %v453
    %v547 = vpack.c.b16 %v456, %v455
    %v548 = vpack.c.b16 %v458, %v457
    %v549 = vpack.c.b16 %v460, %v459
    %v550 = vpack.c.b16 %v462, %v461
    %v551 = vpack.c.b16 %v464, %v463
    %v552 = vpack.c.b16 %v466, %v465
    %v553 = vpack.c.b16 %v468, %v467
    %v554 = vpack.c.b16 %v470, %v469
    %v555 = vpack.c.b16 %v472, %v471
    %v556 = vpack.c.b16 %v474, %v473
    %v557 = vpack.c.b16 %v476, %v475
    %v558 = vpack.c.b16 %v478, %v477
    %v559 = vpack.c.b16 %v480, %v479
    %v560 = vpack.c.b16 %v482, %v481
    %v561 = vpack.c.b16 %v484, %v483
    %v562 = vpack.c.b16 %v486, %v485
    %v563 = vpack.c.b16 %v488, %v487
    %v564 = vpack.c.b16 %v490, %v489
    %v565 = vpack.c.b16 %v492, %v491
    %v566 = vpack.c.b16 %v494, %v493
    %v567 = vpack.c.b16 %v496, %v495
    %v568 = vpack.c.b16 %v498, %v497
    %v569 = vpack.c.b16 %v500, %v499
    %v570 = vpack.c.b16 %v502, %v501
    %v571 = vpack.c.b16 %v504, %v503
    %v572 = vpack.c.b16 %v506, %v505
    %v573 = vpack.c.b16 %v508, %v507
    %v574 = vpack.c.b16 %v510, %v509
    %639 = vmatprep.subr.bf16.mxu0 0
    %640 = vmatpush1.bf16.msra.mxu0 %v511
    %641 = vmatprep.subr.bf16.mxu0 0
    %642 = vmatpush1.bf16.msra.mxu0 %v512
    %643 = vmatprep.subr.bf16.mxu0 0
    %644 = vmatpush1.bf16.msra.mxu0 %v513
    %645 = vmatprep.subr.bf16.mxu0 0
    %646 = vmatpush1.bf16.msra.mxu0 %v514
    %647 = vmatprep.subr.bf16.mxu0 0
    %648 = vmatpush1.bf16.msra.mxu0 %v515
    %649 = vmatprep.subr.bf16.mxu0 0
    %650 = vmatpush1.bf16.msra.mxu0 %v516
    %651 = vmatprep.subr.bf16.mxu0 0
    %652 = vmatpush1.bf16.msra.mxu0 %v517
    %653 = vmatprep.subr.bf16.mxu0 0
    %654 = vmatpush1.bf16.msra.mxu0 %v518
    %655 = vmatprep.subr.bf16.mxu0 0
    %656 = vmatpush1.bf16.msra.mxu0 %v519
    %657 = vmatprep.subr.bf16.mxu0 0
    %658 = vmatpush1.bf16.msra.mxu0 %v520
    %659 = vmatprep.subr.bf16.mxu0 0
    %660 = vmatpush1.bf16.msra.mxu0 %v521
    %661 = vmatprep.subr.bf16.mxu0 0
    %662 = vmatpush1.bf16.msra.mxu0 %v522
    %663 = vmatprep.subr.bf16.mxu0 0
    %664 = vmatpush1.bf16.msra.mxu0 %v523
    %665 = vmatprep.subr.bf16.mxu0 0
    %666 = vmatpush1.bf16.msra.mxu0 %v524
    %667 = vmatprep.subr.bf16.mxu0 0
    %668 = vmatpush1.bf16.msra.mxu0 %v525
    %669 = vmatprep.subr.bf16.mxu0 0
    %670 = vmatpush1.bf16.msra.mxu0 %v526
    %671 = vmatprep.mubr.bf16.mxu0 %v235
    %672 = vmatmul.mubr.bf16.gmra.mrb[0].mxu0 %v221
    %v673 = vpop.f32.mrb[0].mxu0
    %v674 = vadd.f32 %v195, %v673
    %v675 = vpop.f32.mrb[0].mxu0
    %v676 = vpop.f32.mrb[0].mxu0
    %v677 = vpop.f32.mrb[0].mxu0
    %678 = vdwg.mxu0
    %679 = vmatprep.subr.bf16.mxu0 0
    %680 = vmatpush1.bf16.msra.mxu0 %v527
    %681 = vmatprep.subr.bf16.mxu0 0
    %682 = vmatpush1.bf16.msra.mxu0 %v528
    %683 = vmatprep.subr.bf16.mxu0 0
    %684 = vmatpush1.bf16.msra.mxu0 %v529
    %685 = vmatprep.subr.bf16.mxu0 0
    %686 = vmatpush1.bf16.msra.mxu0 %v530
    %687 = vmatprep.subr.bf16.mxu0 0
    %688 = vmatpush1.bf16.msra.mxu0 %v531
    %689 = vmatprep.subr.bf16.mxu0 0
    %690 = vmatpush1.bf16.msra.mxu0 %v532
    %691 = vmatprep.subr.bf16.mxu0 0
    %692 = vmatpush1.bf16.msra.mxu0 %v533
    %693 = vmatprep.subr.bf16.mxu0 0
    %694 = vmatpush1.bf16.msra.mxu0 %v534
    %695 = vmatprep.subr.bf16.mxu0 0
    %696 = vmatpush1.bf16.msra.mxu0 %v535
    %697 = vmatprep.subr.bf16.mxu0 0
    %698 = vmatpush1.bf16.msra.mxu0 %v536
    %699 = vmatprep.subr.bf16.mxu0 0
    %700 = vmatpush1.bf16.msra.mxu0 %v537
    %701 = vmatprep.subr.bf16.mxu0 0
    %702 = vmatpush1.bf16.msra.mxu0 %v538
    %703 = vmatprep.subr.bf16.mxu0 0
    %704 = vmatpush1.bf16.msra.mxu0 %v539
    %705 = vmatprep.subr.bf16.mxu0 0
    %706 = vmatpush1.bf16.msra.mxu0 %v540
    %707 = vmatprep.subr.bf16.mxu0 0
    %708 = vmatpush1.bf16.msra.mxu0 %v541
    %709 = vmatprep.subr.bf16.mxu0 0
    %710 = vmatpush1.bf16.msra.mxu0 %v542
    %711 = vmatprep.mubr.bf16.mxu0 %v245
    %712 = vmatmul.mubr.bf16.gmra.mrb[0].mxu0 %v243
    %v713 = vpop.f32.mrb[0].mxu0
    %v714 = vadd.f32 %v674, %v713
    %v715 = vpop.f32.mrb[0].mxu0
    %v716 = vpop.f32.mrb[0].mxu0
    %v717 = vpop.f32.mrb[0].mxu0
    %718 = vdwg.mxu0
    %719 = vmatprep.subr.bf16.mxu0 0
    %720 = vmatpush1.bf16.msra.mxu0 %v543
    %721 = vmatprep.subr.bf16.mxu0 0
    %722 = vmatpush1.bf16.msra.mxu0 %v544
    %723 = vmatprep.subr.bf16.mxu0 0
    %724 = vmatpush1.bf16.msra.mxu0 %v545
    %725 = vmatprep.subr.bf16.mxu0 0
    %726 = vmatpush1.bf16.msra.mxu0 %v546
    %727 = vmatprep.subr.bf16.mxu0 0
    %728 = vmatpush1.bf16.msra.mxu0 %v547
    %729 = vmatprep.subr.bf16.mxu0 0
    %730 = vmatpush1.bf16.msra.mxu0 %v548
    %731 = vmatprep.subr.bf16.mxu0 0
    %732 = vmatpush1.bf16.msra.mxu0 %v549
    %733 = vmatprep.subr.bf16.mxu0 0
    %734 = vmatpush1.bf16.msra.mxu0 %v550
    %735 = vmatprep.subr.bf16.mxu0 0
    %736 = vmatpush1.bf16.msra.mxu0 %v551
    %737 = vmatprep.subr.bf16.mxu0 0
    %738 = vmatpush1.bf16.msra.mxu0 %v552
    %739 = vmatprep.subr.bf16.mxu0 0
    %740 = vmatpush1.bf16.msra.mxu0 %v553
    %741 = vmatprep.subr.bf16.mxu0 0
    %742 = vmatpush1.bf16.msra.mxu0 %v554
    %743 = vmatprep.subr.bf16.mxu0 0
    %744 = vmatpush1.bf16.msra.mxu0 %v555
    %745 = vmatprep.subr.bf16.mxu0 0
    %746 = vmatpush1.bf16.msra.mxu0 %v556
    %747 = vmatprep.subr.bf16.mxu0 0
    %748 = vmatpush1.bf16.msra.mxu0 %v557
    %749 = vmatprep.subr.bf16.mxu0 0
    %750 = vmatpush1.bf16.msra.mxu0 %v558
    %751 = vmatprep.mubr.bf16.mxu0 %v242
    %752 = vmatmul.mubr.bf16.gmra.mrb[0].mxu0 %v228
    %v753 = vpop.f32.mrb[0].mxu0
    %v754 = vadd.f32 %v714, %v753
    %v755 = vpop.f32.mrb[0].mxu0
    %v756 = vpop.f32.mrb[0].mxu0
    %v757 = vpop.f32.mrb[0].mxu0
    %758 = vdwg.mxu0
    %759 = vmatprep.subr.bf16.mxu0 0
    %760 = vmatpush1.bf16.msra.mxu0 %v559
    %761 = vmatprep.subr.bf16.mxu0 0
    %762 = vmatpush1.bf16.msra.mxu0 %v560
    %763 = vmatprep.subr.bf16.mxu0 0
    %764 = vmatpush1.bf16.msra.mxu0 %v561
    %765 = vmatprep.subr.bf16.mxu0 0
    %766 = vmatpush1.bf16.msra.mxu0 %v562
    %767 = vmatprep.subr.bf16.mxu0 0
    %768 = vmatpush1.bf16.msra.mxu0 %v563
    %769 = vmatprep.subr.bf16.mxu0 0
    %770 = vmatpush1.bf16.msra.mxu0 %v564
    %771 = vmatprep.subr.bf16.mxu0 0
    %772 = vmatpush1.bf16.msra.mxu0 %v565
    %773 = vmatprep.subr.bf16.mxu0 0
    %774 = vmatpush1.bf16.msra.mxu0 %v566
    %775 = vmatprep.subr.bf16.mxu0 0
    %776 = vmatpush1.bf16.msra.mxu0 %v567
    %777 = vmatprep.subr.bf16.mxu0 0
    %778 = vmatpush1.bf16.msra.mxu0 %v568
    %779 = vmatprep.subr.bf16.mxu0 0
    %780 = vmatpush1.bf16.msra.mxu0 %v569
    %781 = vmatprep.subr.bf16.mxu0 0
    %782 = vmatpush1.bf16.msra.mxu0 %v570
    %783 = vmatprep.subr.bf16.mxu0 0
    %784 = vmatpush1.bf16.msra.mxu0 %v571
    %785 = vmatprep.subr.bf16.mxu0 0
    %786 = vmatpush1.bf16.msra.mxu0 %v572
    %787 = vmatprep.subr.bf16.mxu0 0
    %788 = vmatpush1.bf16.msra.mxu0 %v573
    %789 = vmatprep.subr.bf16.mxu0 0
    %790 = vmatpush1.bf16.msra.mxu0 %v574
    %791 = vmatprep.mubr.bf16.mxu0 %v246
    %792 = vmatmul.mubr.bf16.gmra.mrb[0].mxu0 %v244
    %v793 = vpop.f32.mrb[0].mxu0
    %v794 = vadd.f32 %v754, %v793
    %v795 = vpop.f32.mrb[0].mxu0
    %v796 = vpop.f32.mrb[0].mxu0
    %v797 = vpop.f32.mrb[0].mxu0
    %798 = vdwg.mxu0
    %v799 = vmax.f32 %v794, 0.0
    %v800 = vpack.c.bf16 %v799, %v799
    %v801 = vld [vmem:[#allocation7] sm:$0xf]
    %v802 = vld [vmem:[#allocation7 + $0x4] sm:$0xf]
    %v803 = vld [vmem:[#allocation7 + $0x8] sm:$0xf]
    %v804 = vld [vmem:[#allocation7 + $0xc] sm:$0xf]
    %v805 = vld [vmem:[#allocation7 + $0x10] sm:$0xf]
    %v806 = vld [vmem:[#allocation7 + $0x14] sm:$0xf]
    %v807 = vld [vmem:[#allocation7 + $0x18] sm:$0xf]
    %v808 = vld [vmem:[#allocation7 + $0x1c] sm:$0xf]
    %v809 = vld [vmem:[#allocation7 + $0x20] sm:$0xf]
    %v810 = vld [vmem:[#allocation7 + $0x24] sm:$0xf]
    %v811 = vld [vmem:[#allocation7 + $0x28] sm:$0xf]
    %v812 = vld [vmem:[#allocation7 + $0x2c] sm:$0xf]
    %v813 = vld [vmem:[#allocation7 + $0x30] sm:$0xf]
    %v814 = vld [vmem:[#allocation7 + $0x34] sm:$0xf]
    %v815 = vld [vmem:[#allocation7 + $0x38] sm:$0xf]
    %v816 = vld [vmem:[#allocation7 + $0x3c] sm:$0xf]
    %v817 = vld [vmem:[%s4] sm:$0x1]
    %v819 = vlaneseq
    %v820 = vshrl.u32 %v819, 7
    %v821 = vsub.s32 0, %v820
    %v822 = vrot.slane %v817, %v821
    %v840 = vunpack.c.l.b16 %v801
    %v841 = vunpack.c.l.b16 %v802
    %v842 = vunpack.c.l.b16 %v803
    %v843 = vunpack.c.l.b16 %v804
    %v844 = vunpack.c.l.b16 %v805
    %v845 = vunpack.c.l.b16 %v806
    %v846 = vunpack.c.l.b16 %v807
    %v847 = vunpack.c.l.b16 %v808
    %v848 = vunpack.c.l.b16 %v809
    %v849 = vunpack.c.l.b16 %v810
    %v850 = vunpack.c.l.b16 %v811
    %v851 = vunpack.c.l.b16 %v812
    %v852 = vunpack.c.l.b16 %v813
    %v853 = vunpack.c.l.b16 %v814
    %v854 = vunpack.c.l.b16 %v815
    %v855 = vunpack.c.l.b16 %v816
    %v856 = vpack.c.b16 %v841, %v840
    %v857 = vpack.c.b16 %v843, %v842
    %v858 = vpack.c.b16 %v845, %v844
    %v859 = vpack.c.b16 %v847, %v846
    %v860 = vpack.c.b16 %v849, %v848
    %v861 = vpack.c.b16 %v851, %v850
    %v862 = vpack.c.b16 %v853, %v852
    %v863 = vpack.c.b16 %v855, %v854
    %872 = vmatprep.subr.bf16.mxu0 0
    %873 = vmatpush1.bf16.msra.mxu0 %v856
    %874 = vmatprep.subr.bf16.mxu0 0
    %875 = vmatpush1.bf16.msra.mxu0 %v857
    %876 = vmatprep.subr.bf16.mxu0 0
    %877 = vmatpush1.bf16.msra.mxu0 %v858
    %878 = vmatprep.subr.bf16.mxu0 0
    %879 = vmatpush1.bf16.msra.mxu0 %v859
    %880 = vmatprep.subr.bf16.mxu0 0
    %881 = vmatpush1.bf16.msra.mxu0 %v860
    %882 = vmatprep.subr.bf16.mxu0 0
    %883 = vmatpush1.bf16.msra.mxu0 %v861
    %884 = vmatprep.subr.bf16.mxu0 0
    %885 = vmatpush1.bf16.msra.mxu0 %v862
    %886 = vmatprep.subr.bf16.mxu0 0
    %887 = vmatpush1.bf16.msra.mxu0 %v863
    %888 = vmatprep.subr.bf16.mxu0 0
    %889 = vmatpush1.bf16.msra.mxu0 0
    %890 = vmatprep.subr.bf16.mxu0 0
    %891 = vmatpush1.bf16.msra.mxu0 0
    %892 = vmatprep.subr.bf16.mxu0 0
    %893 = vmatpush1.bf16.msra.mxu0 0
    %894 = vmatprep.subr.bf16.mxu0 0
    %895 = vmatpush1.bf16.msra.mxu0 0
    %896 = vmatprep.subr.bf16.mxu0 0
    %897 = vmatpush1.bf16.msra.mxu0 0
    %898 = vmatprep.subr.bf16.mxu0 0
    %899 = vmatpush1.bf16.msra.mxu0 0
    %900 = vmatprep.subr.bf16.mxu0 0
    %901 = vmatpush1.bf16.msra.mxu0 0
    %902 = vmatprep.subr.bf16.mxu0 0
    %903 = vmatpush1.bf16.msra.mxu0 0
    %904 = vmatprep.mubr.bf16.mxu0 0
    %905 = vmatmul.mubr.bf16.gmra.mrb[0].mxu0 %v800
    %v906 = vpop.f32.mrb[0].mxu0
    %v907 = vadd.f32 %v822, %v906
    %v908 = vpop.f32.mrb[0].mxu0
    %v909 = vpop.f32.mrb[0].mxu0
    %v910 = vpop.f32.mrb[0].mxu0
    %911 = vdwg.mxu0
    %912 = vst [vmem:[#allocation8] sm:$0x3] %v907
    // Predicated region
    $region34: #{tpu_custom_call.1} parent=1 // pred_check
      _
    $region35: #{tpu_custom_call.1} parent=1 // pred_check_branch
      %914 = sbr.rel (0) target = $region37
    $region36: #{tpu_custom_call.1} parent=1 // pred_region
      %s916 = ssub.s32 32, 32
      %917 = vsyncadd [#allocation4], %s916
      %s919 = sshll.u32 [#allocation8], 4
      %s920 = int_to_ptr.vmem [resolvable:$true] %s919
      %922 = dma.vmem_to_hbm [thread:$0]  %s920, 32, %s5, [#allocation4]
    $region37: #{tpu_custom_call.1} parent=1 // pred_fallthru
      _
    // Predicated region
    $region38: #{tpu_custom_call.1} parent=1 // pred_check
      _
    $region39: #{tpu_custom_call.1} parent=1 // pred_check_branch
      %924 = sbr.rel (0) target = $region41
    $region40: #{tpu_custom_call.1} parent=1 // pred_region
      %925 = dma.done [#allocation4], 32
    $region41: #{tpu_custom_call.1} parent=1 // pred_fallthru
      _
    %926 = vsyncpa [#allocation3], 1
    %927 = vsyncpa [#allocation6], 1
    %928 = vsyncpa [#allocation4], 1

</llo_original>
